<compile_context>
chip_gen: v7x
topology: tpu7x:2x2x1
jax: 0.10.0
libtpu: 0.0.40
codegen_flags: <defaults>
</compile_context>

<pallas_src>
import jax
import jax.numpy as jnp
from jax import lax
from jax.experimental import pallas as pl
from jax.experimental.pallas import tpu as pltpu

_LANES = 128
_ACC_ROWS = 64                      # (64,128) f32 accumulator = 8 independent vregs
_BLOCK_BYTES = 4 * 1024 * 1024      # ~4 MiB per input block (HBM-streaming sweet spot)
_VMEM_LIMIT = 32 * 1024 * 1024      # 2 inputs x 2 buffers x 4 MiB + outputs, with headroom


def _make_kernel(num_row_tiles, r_tile, valid_rows_last):
    """Build the weighted-MSE partial-sum kernel with static tiling facts baked in."""
    ragged = valid_rows_last != r_tile   # only possible when num_row_tiles > 1

    def _reduce_rows(sq):
        # (rows, 128) f32 -> (ACC_ROWS, 128) partial sums (8 independent acc vregs).
        rows = sq.shape[0]
        if rows % _ACC_ROWS != 0:
            pad = _ACC_ROWS - rows % _ACC_ROWS
            sq = jnp.concatenate([sq, jnp.zeros((pad, _LANES), sq.dtype)], axis=0)
        return sq.reshape(-1, _ACC_ROWS, _LANES).sum(axis=0)

    def kernel(pred_ref, target_ref, out_ref):
        # Grid = (B, T). pred/target blocks: (1, r_tile, 128).
        # out block: (1, ACC_ROWS, 128) per-batch accumulator, resident across t.
        t = pl.program_id(1)

        @pl.when(t == 0)
        def _():
            out_ref[...] = jnp.zeros_like(out_ref)

        d = pred_ref[0].astype(jnp.float32) - target_ref[0].astype(jnp.float32)
        sq = d * d                                           # (r_tile, 128)

        if not ragged:
            out_ref[0] += _reduce_rows(sq)
        else:
            is_last = t == num_row_tiles - 1

            @pl.when(jnp.logical_not(is_last))
            def _():
                out_ref[0] += _reduce_rows(sq)

            @pl.when(is_last)
            def _():
                # Rows beyond the array bound hold undefined data in the last
                # (partial) block -> mask them out before accumulating.
                rows = lax.broadcasted_iota(jnp.int32, sq.shape, 0)
                sq_m = jnp.where(rows < valid_rows_last, sq, 0.0)
                out_ref[0] += _reduce_rows(sq_m)

    return kernel


def regression_loss_with_weights(pred, target, threshold, *,
                                 block_bytes=_BLOCK_BYTES,
                                 vmem_limit_bytes=_VMEM_LIMIT):
    """pred, target: [B, C, H, W] (f32 or bf16); threshold: [B]. Returns scalar loss."""
    B, C, H, W = pred.shape
    n_true = C * H * W
    itemsize = jnp.dtype(pred.dtype).itemsize

    pred2 = pred.reshape(B, n_true)
    target2 = target.reshape(B, n_true)

    # Minimal lane alignment: the [B, r, 128] view is free when n_true % 128 == 0
    # (no HBM copy).  Otherwise pad only to the next multiple of 128; zero padding
    # is exact ((0-0)^2 == 0) and the mean divides by the TRUE element count.
    n_lane = pl.cdiv(n_true, _LANES) * _LANES
    if n_lane != n_true:
        pred2 = jnp.pad(pred2, ((0, 0), (0, n_lane - n_true)))
        target2 = jnp.pad(target2, ((0, 0), (0, n_lane - n_true)))
    r = n_lane // _LANES
    pred3 = pred2.reshape(B, r, _LANES)
    target3 = target2.reshape(B, r, _LANES)

    # Byte-targeted, dtype-aware row tile (rounded to the dtype's sublane pack:
    # 8 rows f32, 16 rows bf16, 32 rows int8/fp8).
    sub = max(8, 32 // itemsize)
    rows_budget = max(sub, (block_bytes // (_LANES * itemsize)) // sub * sub)
    if r <= rows_budget:
        r_tile, num_tiles = r, 1          # full-axis block (no (8,128) constraint)
    else:
        r_tile = rows_budget
        num_tiles = pl.cdiv(r, r_tile)    # last block may be ragged -> masked in-kernel
    valid_rows_last = r - (num_tiles - 1) * r_tile

    kernel = _make_kernel(num_tiles, r_tile, valid_rows_last)

    cost = pl.CostEstimate(
        flops=3 * B * n_true,
        transcendentals=0,
        bytes_accessed=2 * B * n_lane * itemsize + B * _ACC_ROWS * _LANES * 4,
    )

    partials = pl.pallas_call(
        kernel,
        out_shape=jax.ShapeDtypeStruct((B, _ACC_ROWS, _LANES), jnp.float32),
        grid_spec=pltpu.PrefetchScalarGridSpec(
            num_scalar_prefetch=0,
            grid=(B, num_tiles),
            in_specs=[
                pl.BlockSpec((1, r_tile, _LANES), lambda b, t: (b, t, 0)),
                pl.BlockSpec((1, r_tile, _LANES), lambda b, t: (b, t, 0)),
            ],
            out_specs=pl.BlockSpec((1, _ACC_ROWS, _LANES), lambda b, t: (b, 0, 0)),
        ),
        compiler_params=pltpu.CompilerParams(
            # batch axis shards across TensorCores (v7x megacore); the row-tile
            # axis carries the per-batch accumulator so it stays "arbitrary".
            dimension_semantics=("parallel", "arbitrary"),
            vmem_limit_bytes=vmem_limit_bytes,
        ),
        cost_estimate=cost,
    )(pred3, target3)

    # Tiny second-stage reduce: apply the per-batch spatial weight and the mean.
    w = 0.5 + 1.5 * (threshold.astype(jnp.float32) / 15.0)          # (B,)
    per_batch = jnp.sum(partials, axis=(1, 2))                      # (B,)
    return jnp.sum(per_batch * w) / jnp.float32(B * n_true)


def _reference(pred, target, threshold):
    """Pure-JAX reference mirroring the PyTorch forward."""
    base = (pred.astype(jnp.float32) - target.astype(jnp.float32)) ** 2
    w = 0.5 + 1.5 * (threshold.astype(jnp.float32) / 15.0)
    return (base * w[:, None, None, None]).mean()


if __name__ == "__main__":
    key = jax.random.PRNGKey(0)
    k1, k2, k3 = jax.random.split(key, 3)

    B, C = 2, 4
    threshold = jax.random.uniform(k3, (B,), dtype=jnp.float32, minval=0.0, maxval=15.0)

    # 1) lane-aligned f32 case (no padding, single tile)
    pred = jax.random.normal(k1, (B, C, 16, 16), dtype=jnp.float32)
    target = jax.random.normal(k2, (B, C, 16, 16), dtype=jnp.float32)
    loss = jax.block_until_ready(regression_loss_with_weights(pred, target, threshold))
    ref = _reference(pred, target, threshold)
    assert jnp.allclose(loss, ref, rtol=1e-5, atol=1e-6), ("aligned f32", loss, ref)

    # 2) non-aligned bf16 case (minimal 128-pad, full-axis small tile)
    pred_b = jax.random.normal(k2, (B, C, 10, 10), dtype=jnp.bfloat16)
    target_b = jax.random.normal(k1, (B, C, 10, 10), dtype=jnp.bfloat16)
    loss_b = jax.block_until_ready(regression_loss_with_weights(pred_b, target_b, threshold))
    ref_b = _reference(pred_b, target_b, threshold)
    assert jnp.allclose(loss_b, ref_b, rtol=1e-5, atol=1e-6), ("bf16", loss_b, ref_b)

    # 3) multi-tile + ragged last tile (small block_bytes override forces the
    #    in-kernel tail-masking path and multi-step accumulation)
    pred_c = jax.random.normal(k3, (B, C, 24, 24), dtype=jnp.float32)
    target_c = jax.random.normal(k1, (B, C, 24, 24), dtype=jnp.float32)
    loss_c = jax.block_until_ready(
        regression_loss_with_weights(pred_c, target_c, threshold, block_bytes=8 * 1024))
    ref_c = _reference(pred_c, target_c, threshold)
    assert jnp.allclose(loss_c, ref_c, rtol=1e-5, atol=1e-6), ("ragged", loss_c, ref_c)

    print("KERNEL_OK")
</pallas_src>

<mosaic_0001>
module attributes {stable_mosaic.version = 11 : i64} {
  func.func @kernel(%arg0: i32, %arg1: i32, %arg2: memref<1x8x128xf32, #tpu.memory_space<vmem>>, %arg3: memref<1x8x128xf32, #tpu.memory_space<vmem>>, %arg4: memref<1x64x128xf32, #tpu.memory_space<vmem>>) attributes {dimension_semantics = [#tpu.dimension_semantics<parallel>, #tpu.dimension_semantics<arbitrary>], iteration_bounds = array<i64: 2, 1>, scalar_prefetch = 0 : i64, scratch_operands = 0 : i64, tpu.core_type = #tpu.core_type<tc>, window_params = [{transform_indices = @transform_0, window_bounds = array<i64: 1, 8, 128>}, {transform_indices = @transform_1, window_bounds = array<i64: 1, 8, 128>}, {transform_indices = @transform_2, window_bounds = array<i64: 1, 64, 128>}]} {
    %c0_i32 = arith.constant 0 : i32
    %0 = arith.cmpi eq, %arg1, %c0_i32 : i32
    %1 = arith.extui %0 : i1 to i32
    %c0_i32_0 = arith.constant 0 : i32
    %2 = arith.cmpi ne, %1, %c0_i32_0 : i32
    scf.if %2 {
      %cst_13 = arith.constant 0.000000e+00 : f32
      %19 = vector.broadcast %cst_13 : f32 to vector<1x64x128xf32>
      %c0_14 = arith.constant 0 : index
      %c0_15 = arith.constant 0 : index
      %c0_16 = arith.constant 0 : index
      %20 = vector.load %arg4[%c0_14, %c0_15, %c0_16] : memref<1x64x128xf32, #tpu.memory_space<vmem>>, vector<1x64x128xf32>
      tpu.vector_store %arg4[%c0_14, %c0_15, %c0_16], %19 {strides = array<i32>} : memref<1x64x128xf32, #tpu.memory_space<vmem>>, vector<1x64x128xf32>,
    } else {
    }
    %c0 = arith.constant 0 : index
    %c0_1 = arith.constant 0 : index
    %c0_2 = arith.constant 0 : index
    %3 = vector.load %arg2[%c0, %c0_1, %c0_2] : memref<1x8x128xf32, #tpu.memory_space<vmem>>, vector<1x8x128xf32>
    %4 = vector.shape_cast %3 : vector<1x8x128xf32> to vector<8x128xf32>
    %c0_3 = arith.constant 0 : index
    %c0_4 = arith.constant 0 : index
    %c0_5 = arith.constant 0 : index
    %5 = vector.load %arg3[%c0_3, %c0_4, %c0_5] : memref<1x8x128xf32, #tpu.memory_space<vmem>>, vector<1x8x128xf32>
    %6 = vector.shape_cast %5 : vector<1x8x128xf32> to vector<8x128xf32>
    %7 = arith.subf %4, %6 : vector<8x128xf32>
    %8 = arith.mulf %7, %7 : vector<8x128xf32>
    %c0_6 = arith.constant 0 : index
    %c0_7 = arith.constant 0 : index
    %c0_8 = arith.constant 0 : index
    %9 = vector.load %arg4[%c0_6, %c0_7, %c0_8] : memref<1x64x128xf32, #tpu.memory_space<vmem>>, vector<1x64x128xf32>
    %10 = vector.shape_cast %9 : vector<1x64x128xf32> to vector<64x128xf32>
    %cst = arith.constant 0.000000e+00 : f32
    %11 = vector.broadcast %cst : f32 to vector<56x128xf32>
    %12 = tpu.concatenate %8, %11 in 0 : vector<8x128xf32>, vector<56x128xf32> -> vector<64x128xf32>
    %13 = vector.shape_cast %12 : vector<64x128xf32> to vector<1x64x128xf32>
    %cst_9 = arith.constant dense<0.000000e+00> : vector<64x128xf32>
    %14 = vector.multi_reduction <add>, %13, %cst_9 [0] : vector<1x64x128xf32> to vector<64x128xf32>
    %15 = arith.addf %10, %14 : vector<64x128xf32>
    %c0_10 = arith.constant 0 : index
    %c0_11 = arith.constant 0 : index
    %c0_12 = arith.constant 0 : index
    %16 = vector.load %arg4[%c0_10, %c0_11, %c0_12] : memref<1x64x128xf32, #tpu.memory_space<vmem>>, vector<1x64x128xf32>
    %17 = vector.shape_cast %16 : vector<1x64x128xf32> to vector<64x128xf32>
    %18 = vector.shape_cast %15 : vector<64x128xf32> to vector<1x64x128xf32>
    tpu.vector_store %arg4[%c0_10, %c0_11, %c0_12], %18 {strides = array<i32>} : memref<1x64x128xf32, #tpu.memory_space<vmem>>, vector<1x64x128xf32>,
    return
  }
  func.func @transform_0(%arg0: i32, %arg1: i32) -> (i32, i32, i32) {
    %c0_i32 = arith.constant 0 : i32
    %c0_i32_0 = arith.constant 0 : i32
    return %arg0, %arg1, %c0_i32 : i32, i32, i32
  }
  func.func @transform_1(%arg0: i32, %arg1: i32) -> (i32, i32, i32) {
    %c0_i32 = arith.constant 0 : i32
    %c0_i32_0 = arith.constant 0 : i32
    return %arg0, %arg1, %c0_i32 : i32, i32, i32
  }
  func.func @transform_2(%arg0: i32, %arg1: i32) -> (i32, i32, i32) {
    %c0_i32 = arith.constant 0 : i32
    %c0_i32_0 = arith.constant 0 : i32
    %c0_i32_1 = arith.constant 0 : i32
    return %arg0, %c0_i32, %c0_i32_0 : i32, i32, i32
  }
}

</mosaic_0001>

<llo_original>
// kernel: tpu_custom_call.1
$region0: #{tpu_custom_call.1}
  #allocation0 [shape = 'u32[]', space=smem, size = 0x4, offset = 0x4, fixed_abs, tag = 'smem constant byte address 0x4 - core index']
  #allocation1 [shape = 'u32[144,128]{1,0:T(1,128)}', space=vmem, size = 0x12000, scoped, tag = 'internal scratch']
  %s0 = inlined_call_operand.hbm [shape: f32[2,8,128], index: 0, kind: input, shape index: {}]
  %s1 = inlined_call_operand.hbm [shape: f32[2,8,128], index: 1, kind: input, shape index: {}]
  %s2 = inlined_call_operand.hbm [shape: f32[2,64,128], index: 2, kind: output, shape index: {}]
  %s3 = sld [smem:[#allocation0]]
  $region53: #{tpu_custom_call.1} parent=0
    _
  %s5 = ssub.s32 1, %s3
  %s6 = scalar_select 0, %s5, %s3
  $region1: #{tpu_custom_call.1} parent=0
    #allocation2 [shape = 'u8[8192]{0}', space=vmem, size = 0x2000, scoped, tag = 'input window, operand 0']
    #allocation3 [shape = 's32[2]{0}', space=sflag, size = 0x8, scoped, tag = 'scoped memory for tpu_custom_call.1']
    #allocation4 [shape = 's32[2]{0}', space=sflag, size = 0x8, scoped, tag = 'scoped memory for tpu_custom_call.1']
    #allocation5 [shape = 'u8[8192]{0}', space=vmem, size = 0x2000, scoped, tag = 'input window, operand 1']
    #allocation6 [shape = 's32[2]{0}', space=sflag, size = 0x8, scoped, tag = 'scoped memory for tpu_custom_call.1']
    #allocation7 [shape = 'u8[65536]{0}', space=vmem, size = 0x10000, scoped, tag = 'output window, operand 0']
    %7 = vsyncpa [#allocation3], 0
    %s8 = scalar_lea.sflag [#allocation3], 1
    %9 = vsyncpa %s8, 0
    %10 = vsyncpa [#allocation6], 0
    %s11 = scalar_lea.sflag [#allocation6], 1
    %12 = vsyncpa %s11, 0
    %13 = vsyncpa [#allocation4], 0
    %s14 = scalar_lea.sflag [#allocation4], 1
    %15 = vsyncpa %s14, 0
    loop: start=0, step=1, limit=4
    $region2: #{tpu_custom_call.1} parent=1 // loop_pre_header
      _
    $region3: #{tpu_custom_call.1} parent=1 // loop_header
      %s17 = sphi 0, %s21
      %p18 = scmp.ge.s32.totalorder %s17, 4
      %s24 = sphi 0, %s36
      %s25 = sphi 0, %s32
      %s26 = sphi 0, %s24
      %s27 = sphi 0, %s25
      %s28 = sphi 0, %s26
      %s29 = sphi 0, %s27
      %s41 = sphi 0, %s43
      %s44 = sphi 0, %s41
      %s45 = sphi 0, %s44
      %s61 = sphi 0, %s45
      %s69 = sphi 0, %s71
      %s72 = sphi 0, %s69
      %s73 = sphi 0, %s72
      %s89 = sphi 0, %s73
      %s95 = sphi 0, %s97
      %s98 = sphi 0, %s95
      %s99 = sphi 0, %s98
      %s115 = sphi 0, %s99
    $region4: #{tpu_custom_call.1} parent=1 // loop_header_branch
      %20 = sbr.rel (%p18) target = $region8
    $region5: #{tpu_custom_call.1} parent=1 // loop_body
      %s22 = ssub.s32 %s17, 1
      %s23 = ssub.s32 %s17, 2
      %s30 = sadd.s32 1, %s25
      %p31 = scmp.ge.s32.totalorder %s30, 1
      %s32 = scalar_select %p31, 0, %s30
      %s33 = sadd.s32 1, %s24
      %s34 = scalar_select %p31, %s33, %s24
      %p35 = scmp.ge.s32.totalorder %s34, 2
      %s36 = scalar_select %p35, 0, %s34
      %s37 = ssub.s32 %s24, %s36
      %s38 = ssub.s32 %s25, %s32
      %s39 = sor.u32 %s37, %s38
      %p40 = scmp.eq.s32.totalorder %s39, 0
      %s42 = sadd.s32 %s41, 1
      %s43 = scalar_select %p40, %s41, %s42
      %p46 = pneg %p40
      %p47 = scmp.eq.s32.totalorder %s17, 1
      %p48 = por %p46, %p47
      %p49 = scmp.ne.s32.totalorder %s41, %s44
      %p50 = scmp.eq.s32.totalorder %s17, 0
      %p51 = por %p49, %p50
      %p52 = scmp.ne.s32.totalorder %s41, %s44
      %p53 = scmp.eq.s32.totalorder %s22, 1
      %p54 = por %p52, %p53
      %p55 = scmp.ne.s32.totalorder %s44, %s45
      %p56 = scmp.eq.s32.totalorder %s22, 0
      %p57 = por %p55, %p56
      %p58 = scmp.ne.s32.totalorder %s44, %s45
      %p59 = scmp.eq.s32.totalorder %s23, 1
      %p60 = por %p58, %p59
      %p62 = scmp.ne.s32.totalorder %s45, %s61
      %p63 = scmp.eq.s32.totalorder %s23, 0
      %p64 = por %p62, %p63
      %s65 = ssub.s32 %s24, %s36
      %s66 = ssub.s32 %s25, %s32
      %s67 = sor.u32 %s65, %s66
      %p68 = scmp.eq.s32.totalorder %s67, 0
      %s70 = sadd.s32 %s69, 1
      %s71 = scalar_select %p68, %s69, %s70
      %p74 = pneg %p68
      %p75 = scmp.eq.s32.totalorder %s17, 1
      %p76 = por %p74, %p75
      %p77 = scmp.ne.s32.totalorder %s69, %s72
      %p78 = scmp.eq.s32.totalorder %s17, 0
      %p79 = por %p77, %p78
      %p80 = scmp.ne.s32.totalorder %s69, %s72
      %p81 = scmp.eq.s32.totalorder %s22, 1
      %p82 = por %p80, %p81
      %p83 = scmp.ne.s32.totalorder %s72, %s73
      %p84 = scmp.eq.s32.totalorder %s22, 0
      %p85 = por %p83, %p84
      %p86 = scmp.ne.s32.totalorder %s72, %s73
      %p87 = scmp.eq.s32.totalorder %s23, 1
      %p88 = por %p86, %p87
      %p90 = scmp.ne.s32.totalorder %s73, %s89
      %p91 = scmp.eq.s32.totalorder %s23, 0
      %p92 = por %p90, %p91
      %s93 = ssub.s32 %s24, %s36
      %p94 = scmp.eq.s32.totalorder %s93, 0
      %s96 = sadd.s32 %s95, 1
      %s97 = scalar_select %p94, %s95, %s96
      %p100 = pneg %p94
      %p101 = scmp.eq.s32.totalorder %s17, 1
      %p102 = por %p100, %p101
      %p103 = scmp.ne.s32.totalorder %s95, %s98
      %p104 = scmp.eq.s32.totalorder %s17, 0
      %p105 = por %p103, %p104
      %p106 = scmp.ne.s32.totalorder %s95, %s98
      %p107 = scmp.eq.s32.totalorder %s22, 1
      %p108 = por %p106, %p107
      %p109 = scmp.ne.s32.totalorder %s98, %s99
      %p110 = scmp.eq.s32.totalorder %s22, 0
      %p111 = por %p109, %p110
      %p112 = scmp.ne.s32.totalorder %s98, %s99
      %p113 = scmp.eq.s32.totalorder %s23, 1
      %p114 = por %p112, %p113
      %p116 = scmp.ne.s32.totalorder %s99, %s115
      %p117 = scmp.eq.s32.totalorder %s23, 0
      %p118 = por %p116, %p117
      %p119 = scmp.le.s32.totalorder 1, %s17
      %p120 = scmp.lt.s32.totalorder %s17, 3
      %p121 = pnand %p119, %p120
      %p122 = pneg %p121
      // Predicated region
      $region9: #{tpu_custom_call.1} parent=5 // pred_check
        _
      $region10: #{tpu_custom_call.1} parent=5 // pred_check_branch
        %124 = sbr.rel (%p121) target = $region12
      $region11: #{tpu_custom_call.1} parent=5 // pred_region
        %s125 = ssub.s32 %s17, 1
      $region12: #{tpu_custom_call.1} parent=5 // pred_fallthru
        _
      %p126 = scmp.lt.s32.totalorder %s17, 2
      // Predicated region
      $region13: #{tpu_custom_call.1} parent=5 // pred_check
        %p127 = pneg %p126
      $region14: #{tpu_custom_call.1} parent=5 // pred_check_branch
        %129 = sbr.rel (%p127) target = $region16
      $region15: #{tpu_custom_call.1} parent=5 // pred_region
        // Predicated region
        $region17: #{tpu_custom_call.1} parent=15 // pred_check
          %p130 = pneg %p51
        $region18: #{tpu_custom_call.1} parent=15 // pred_check_branch
          %132 = sbr.rel (%p130) target = $region20
        $region19: #{tpu_custom_call.1} parent=15 // pred_region
          %s133 = sand.u32 %s41, 1
          %s134 = scalar_lea.sflag [#allocation3], %s133
          %s135 = sand.u32 %s41, 1
          %s136 = smul.addr %s135, 8
          %s137 = scalar_lea.vmem [#allocation2], %s136
          %s139 = ssub.s32 128, 128
          %140 = vsyncadd %s134, %s139
          %s141 = sadd.s32 %s25, %s24
          %s142 = smul.addr %s141, 128
          %s143 = scalar_lea.hbm %s0, %s142
          %s145 = sshll.u32 %s137, 4
          %s146 = int_to_ptr.vmem [resolvable:$true] %s145
          %148 = dma.hbm_to_vmem [thread:$0]  %s143, 128, %s146, %s134
        $region20: #{tpu_custom_call.1} parent=15 // pred_fallthru
          _
        // Predicated region
        $region21: #{tpu_custom_call.1} parent=15 // pred_check
          %p149 = pneg %p79
        $region22: #{tpu_custom_call.1} parent=15 // pred_check_branch
          %151 = sbr.rel (%p149) target = $region24
        $region23: #{tpu_custom_call.1} parent=15 // pred_region
          %s152 = sand.u32 %s69, 1
          %s153 = scalar_lea.sflag [#allocation6], %s152
          %s154 = sand.u32 %s69, 1
          %s155 = smul.addr %s154, 8
          %s156 = scalar_lea.vmem [#allocation5], %s155
          %s158 = ssub.s32 128, 128
          %159 = vsyncadd %s153, %s158
          %s160 = sadd.s32 %s25, %s24
          %s161 = smul.addr %s160, 128
          %s162 = scalar_lea.hbm %s1, %s161
          %s164 = sshll.u32 %s156, 4
          %s165 = int_to_ptr.vmem [resolvable:$true] %s164
          %167 = dma.hbm_to_vmem [thread:$0]  %s162, 128, %s165, %s153
        $region24: #{tpu_custom_call.1} parent=15 // pred_fallthru
          _
      $region16: #{tpu_custom_call.1} parent=5 // pred_fallthru
        _
      %p168 = scmp.le.s32.totalorder 1, %s17
      %p169 = scmp.lt.s32.totalorder %s17, 3
      %p170 = pnand %p168, %p169
      %p171 = pneg %p170
      // Predicated region
      $region25: #{tpu_custom_call.1} parent=5 // pred_check
        _
      $region26: #{tpu_custom_call.1} parent=5 // pred_check_branch
        %173 = sbr.rel (%p170) target = $region28
      $region27: #{tpu_custom_call.1} parent=5 // pred_region
        %s174 = ssub.s32 %s17, 1
        %s175 = sand.u32 %s44, 1
        %s176 = scalar_lea.sflag [#allocation3], %s175
        %s177 = sand.u32 %s44, 1
        %s178 = smul.addr %s177, 8
        %s179 = scalar_lea.vmem [#allocation2], %s178
        // Predicated region
        $region29: #{tpu_custom_call.1} parent=27 // pred_check
          %p180 = pneg %p57
        $region30: #{tpu_custom_call.1} parent=27 // pred_check_branch
          %182 = sbr.rel (%p180) target = $region32
        $region31: #{tpu_custom_call.1} parent=27 // pred_region
          %183 = dma.done %s176, 128
        $region32: #{tpu_custom_call.1} parent=27 // pred_fallthru
          _
        %s184 = sand.u32 %s72, 1
        %s185 = scalar_lea.sflag [#allocation6], %s184
        %s186 = sand.u32 %s72, 1
        %s187 = smul.addr %s186, 8
        %s188 = scalar_lea.vmem [#allocation5], %s187
        // Predicated region
        $region33: #{tpu_custom_call.1} parent=27 // pred_check
          %p189 = pneg %p85
        $region34: #{tpu_custom_call.1} parent=27 // pred_check_branch
          %191 = sbr.rel (%p189) target = $region36
        $region35: #{tpu_custom_call.1} parent=27 // pred_region
          %192 = dma.done %s185, 128
        $region36: #{tpu_custom_call.1} parent=27 // pred_fallthru
          _
        %s193 = sand.u32 %s44, 1
        %s194 = scalar_lea.sflag [#allocation3], %s193
        %s195 = sand.u32 %s44, 1
        %s196 = smul.addr %s195, 8
        %s197 = scalar_lea.vmem [#allocation2], %s196
        %p198 = pneg %p57
        %p199 = pneg %p54
        %s200 = sand.u32 %s72, 1
        %s201 = scalar_lea.sflag [#allocation6], %s200
        %s202 = sand.u32 %s72, 1
        %s203 = smul.addr %s202, 8
        %s204 = scalar_lea.vmem [#allocation5], %s203
        %p205 = pneg %p85
        %p206 = pneg %p82
        %p207 = pneg %p111
        %p208 = pneg %p108
        %s209 = sand.u32 %s98, 1
        %s210 = scalar_lea.sflag [#allocation4], %s209
        %s211 = sand.u32 %s98, 1
        %s212 = smul.addr %s211, 64
        %s213 = scalar_lea.vmem [#allocation7], %s212
        %p214 = scmp.eq.s32.totalorder %s27, 0
        // Predicated region
        $region37: #{tpu_custom_call.1} parent=27 // pred_check
          %p215 = pneg %p214
        $region38: #{tpu_custom_call.1} parent=27 // pred_check_branch
          %217 = sbr.rel (%p215) target = $region40
        $region39: #{tpu_custom_call.1} parent=27 // pred_region
          %218 = vst [vmem:[%s213] sm:$0xff] 0.0
          %219 = vst [vmem:[%s213 + $0x8] sm:$0xff] 0.0
          %220 = vst [vmem:[%s213 + $0x10] sm:$0xff] 0.0
          %221 = vst [vmem:[%s213 + $0x18] sm:$0xff] 0.0
          %222 = vst [vmem:[%s213 + $0x20] sm:$0xff] 0.0
          %223 = vst [vmem:[%s213 + $0x28] sm:$0xff] 0.0
          %224 = vst [vmem:[%s213 + $0x30] sm:$0xff] 0.0
          %225 = vst [vmem:[%s213 + $0x38] sm:$0xff] 0.0
        $region40: #{tpu_custom_call.1} parent=27 // pred_fallthru
          _
        %v226 = vld [vmem:[%s179] sm:$0xff]
        %v227 = vld [vmem:[%s188] sm:$0xff]
        %v228 = vsub.f32 %v226, %v227
        %v229 = vmul.f32 %v228, %v228
        %v230 = vld [vmem:[%s213] sm:$0xff]
        %v231 = vld [vmem:[%s213 + $0x8] sm:$0xff]
        %v232 = vld [vmem:[%s213 + $0x10] sm:$0xff]
        %v233 = vld [vmem:[%s213 + $0x18] sm:$0xff]
        %v234 = vld [vmem:[%s213 + $0x20] sm:$0xff]
        %v235 = vld [vmem:[%s213 + $0x28] sm:$0xff]
        %v236 = vld [vmem:[%s213 + $0x30] sm:$0xff]
        %v237 = vld [vmem:[%s213 + $0x38] sm:$0xff]
        %v238 = vadd.f32 %v229, 0.0
        %v239 = vadd.f32 %v230, %v238
        %v240 = vadd.f32 %v231, 0.0
        %v241 = vadd.f32 %v232, 0.0
        %v242 = vadd.f32 %v233, 0.0
        %v243 = vadd.f32 %v234, 0.0
        %v244 = vadd.f32 %v235, 0.0
        %v245 = vadd.f32 %v236, 0.0
        %v246 = vadd.f32 %v237, 0.0
        %247 = vst [vmem:[%s213] sm:$0xff] %v239
        %248 = vst [vmem:[%s213 + $0x8] sm:$0xff] %v240
        %249 = vst [vmem:[%s213 + $0x10] sm:$0xff] %v241
        %250 = vst [vmem:[%s213 + $0x18] sm:$0xff] %v242
        %251 = vst [vmem:[%s213 + $0x20] sm:$0xff] %v243
        %252 = vst [vmem:[%s213 + $0x28] sm:$0xff] %v244
        %253 = vst [vmem:[%s213 + $0x30] sm:$0xff] %v245
        %254 = vst [vmem:[%s213 + $0x38] sm:$0xff] %v246
        %s255 = sand.u32 %s98, 1
        %s256 = scalar_lea.sflag [#allocation4], %s255
        %s257 = sand.u32 %s98, 1
        %s258 = smul.addr %s257, 64
        %s259 = scalar_lea.vmem [#allocation7], %s258
        // Predicated region
        $region41: #{tpu_custom_call.1} parent=27 // pred_check
          %p260 = pneg %p108
        $region42: #{tpu_custom_call.1} parent=27 // pred_check_branch
          %262 = sbr.rel (%p260) target = $region44
        $region43: #{tpu_custom_call.1} parent=27 // pred_region
          %s264 = ssub.s32 1024, 1024
          %265 = vsyncadd %s256, %s264
          %s266 = smul.addr %s26, 8
          %s267 = smul.addr %s266, 128
          %s268 = scalar_lea.hbm %s2, %s267
          %s269 = sshll.u32 %s259, 4
          %s270 = int_to_ptr.vmem [resolvable:$true] %s269
          %275 = dma.vmem_to_hbm [thread:$0]  %s270, 1024, %s268, %s256, 128, 128, 8
        $region44: #{tpu_custom_call.1} parent=27 // pred_fallthru
          _
      $region28: #{tpu_custom_call.1} parent=5 // pred_fallthru
        _
      %p276 = scmp.le.s32.totalorder 2, %s17
      // Predicated region
      $region45: #{tpu_custom_call.1} parent=5 // pred_check
        %p277 = pneg %p276
      $region46: #{tpu_custom_call.1} parent=5 // pred_check_branch
        %279 = sbr.rel (%p277) target = $region48
      $region47: #{tpu_custom_call.1} parent=5 // pred_region
        %s280 = ssub.s32 %s17, 2
        // Predicated region
        $region49: #{tpu_custom_call.1} parent=47 // pred_check
          %p281 = pneg %p114
        $region50: #{tpu_custom_call.1} parent=47 // pred_check_branch
          %283 = sbr.rel (%p281) target = $region52
        $region51: #{tpu_custom_call.1} parent=47 // pred_region
          %s284 = sand.u32 %s99, 1
          %s285 = scalar_lea.sflag [#allocation4], %s284
          %s286 = sand.u32 %s99, 1
          %s287 = smul.addr %s286, 64
          %s288 = scalar_lea.vmem [#allocation7], %s287
          %289 = dma.done %s285, 1024
        $region52: #{tpu_custom_call.1} parent=47 // pred_fallthru
          _
      $region48: #{tpu_custom_call.1} parent=5 // pred_fallthru
        _
    $region6: #{tpu_custom_call.1} parent=1 // loop_footer
      %s21 = sadd.s32 1, %s17
    $region7: #{tpu_custom_call.1} parent=1 // loop_footer_branch
      %16 = sbr.rel target = $region3
    $region8: #{tpu_custom_call.1} parent=1 // loop_exit
      _
    %290 = vsyncpa [#allocation3], 1
    %s291 = scalar_lea.sflag [#allocation3], 1
    %292 = vsyncpa %s291, 1
    %293 = vsyncpa [#allocation6], 1
    %s294 = scalar_lea.sflag [#allocation6], 1
    %295 = vsyncpa %s294, 1
    %296 = vsyncpa [#allocation4], 1
    %s297 = scalar_lea.sflag [#allocation4], 1
    %298 = vsyncpa %s297, 1

</llo_original>
